<compile_context>
chip_gen: v7x
topology: tpu7x:2x2x1
jax: 0.10.0
libtpu: 0.0.40
codegen_flags: <defaults>
</compile_context>

<pallas_src>
import functools

import jax
import jax.numpy as jnp
from jax.experimental import pallas as pl
from jax.experimental.pallas import tpu as pltpu

HIDDEN = 128


def _round_up(x, m):
    return ((x + m - 1) // m) * m


def actor_kernel(x_ref, w1_ref, b1_ref, w2_ref, b2_ref, w3_ref, b3_ref, o_ref):
    # x_ref: (TB, S) f32 streamed; weights bf16; biases f32; o_ref: (TB, A) f32.
    x = x_ref[...].astype(jnp.bfloat16)  # in-kernel cast: free VPU work

    h1 = jnp.dot(x, w1_ref[...], preferred_element_type=jnp.float32) + b1_ref[...]
    h1 = jnp.maximum(h1, 0.0)

    h2 = jnp.dot(h1.astype(jnp.bfloat16), w2_ref[...],
                 preferred_element_type=jnp.float32) + b2_ref[...]
    h2 = jnp.maximum(h2, 0.0)

    h3 = jnp.dot(h2.astype(jnp.bfloat16), w3_ref[...],
                 preferred_element_type=jnp.float32) + b3_ref[...]
    o_ref[...] = jnp.tanh(h3).astype(o_ref.dtype)


def prepare_actor_params(params):
    """Cast the f32 (in, out) params into the kernel's layout once:
    bf16 weights (no padding needed), f32 biases."""
    w1, b1, w2, b2, w3, b3 = params
    return (w1.astype(jnp.bfloat16), b1.astype(jnp.float32),
            w2.astype(jnp.bfloat16), b2.astype(jnp.float32),
            w3.astype(jnp.bfloat16), b3.astype(jnp.float32))


@functools.partial(jax.jit, static_argnames=("tile_b",))
def actor_forward(state, prepared_params, tile_b=1024):
    """state: (B, state_size) f32 -> (B, action_size) f32."""
    w1, b1, w2, b2, w3, b3 = prepared_params
    B, S = state.shape
    A = w3.shape[1]

    # Batch tile selection:
    #   * tiny batches -> single full (8-rounded) tile (launch-overhead regime),
    #   * otherwise cap TB at tile_b but also at ~B/2 so the "parallel" batch
    #     grid has >=2 steps (both v7x TensorCores get work; no effect v5e/v6e).
    b8 = _round_up(B, 8)
    if b8 <= 8:
        TB = b8
    else:
        TB = min(tile_b, _round_up((B + 1) // 2, 8))
    B_pad = _round_up(B, TB)

    x = state
    if B_pad != B:
        x = jnp.pad(x, ((0, B_pad - B), (0, 0)))  # f32 rows only, cheap

    const = lambda a: pl.BlockSpec(a.shape, lambda i: (0,) * a.ndim)

    out = pl.pallas_call(
        actor_kernel,
        out_shape=jax.ShapeDtypeStruct((B_pad, A), jnp.float32),
        grid=(B_pad // TB,),
        in_specs=[
            pl.BlockSpec((TB, S), lambda i: (i, 0)),   # streamed raw f32 state
            const(w1), const(b1),                      # VMEM-resident params
            const(w2), const(b2),
            const(w3), const(b3),
        ],
        out_specs=pl.BlockSpec((TB, A), lambda i: (i, 0)),  # tiny direct writeback
        compiler_params=pltpu.CompilerParams(
            dimension_semantics=("parallel",)),
    )(x, w1, b1, w2, b2, w3, b3)

    return out if B_pad == B else out[:B]


def init_actor_params(key, state_size, action_size, hidden_units=(128, 128)):
    """Deterministic init mirroring the PyTorch module's reset_parameters():
    fc1/fc2 weights ~ U(-sqrt(1/weight.size(0)), +), fc3 weights ~ U(-3e-3, 3e-3).
    Biases use PyTorch's default Linear init U(-1/sqrt(in), 1/sqrt(in))."""
    k = jax.random.split(key, 6)
    h1, h2 = hidden_units

    lim1 = (1.0 / h1) ** 0.5  # hidden_init uses weight.size()[0] == out_features
    lim2 = (1.0 / h2) ** 0.5

    # Weights stored as (in, out) so the kernel computes x @ W (== x @ W_pt.T).
    w1 = jax.random.uniform(k[0], (state_size, h1), jnp.float32, -lim1, lim1)
    w2 = jax.random.uniform(k[1], (h1, h2), jnp.float32, -lim2, lim2)
    w3 = jax.random.uniform(k[2], (h2, action_size), jnp.float32, -3e-3, 3e-3)

    b1 = jax.random.uniform(k[3], (1, h1), jnp.float32,
                            -1.0 / state_size ** 0.5, 1.0 / state_size ** 0.5)
    b2 = jax.random.uniform(k[4], (1, h2), jnp.float32,
                            -1.0 / h1 ** 0.5, 1.0 / h1 ** 0.5)
    b3 = jax.random.uniform(k[5], (1, action_size), jnp.float32,
                            -1.0 / h2 ** 0.5, 1.0 / h2 ** 0.5)
    return (w1, b1, w2, b2, w3, b3)


def actor_reference(state, params):
    """Pure-JAX f32 reference of the forward pass."""
    w1, b1, w2, b2, w3, b3 = params
    h1 = jnp.maximum(state @ w1 + b1, 0.0)
    h2 = jnp.maximum(h1 @ w2 + b2, 0.0)
    return jnp.tanh(h2 @ w3 + b3)


if __name__ == "__main__":
    state_size = 33
    action_size = 4
    batch = 50  # non-multiple of the tile: exercises padding + 2 grid steps

    key = jax.random.PRNGKey(0)
    k_params, k_state = jax.random.split(key)

    params = init_actor_params(k_params, state_size, action_size)
    prepared = prepare_actor_params(params)
    state = jax.random.normal(k_state, (batch, state_size), jnp.float32)

    out = actor_forward(state, prepared)
    out = jax.block_until_ready(out)

    ref = actor_reference(state, params)
    assert out.shape == (batch, action_size)
    # bf16 weights/activations -> relaxed tolerance vs the f32 reference.
    assert jnp.allclose(out, ref, atol=2e-2, rtol=2e-2), float(
        jnp.max(jnp.abs(out - ref)))

    print("KERNEL_OK")
</pallas_src>

<mosaic_0001>
module attributes {stable_mosaic.version = 11 : i64} {
  func.func @actor_kernel(%arg0: i32, %arg1: memref<32x33xf32, #tpu.memory_space<vmem>>, %arg2: memref<33x128xbf16, #tpu.memory_space<vmem>>, %arg3: memref<1x128xf32, #tpu.memory_space<vmem>>, %arg4: memref<128x128xbf16, #tpu.memory_space<vmem>>, %arg5: memref<1x128xf32, #tpu.memory_space<vmem>>, %arg6: memref<128x4xbf16, #tpu.memory_space<vmem>>, %arg7: memref<1x4xf32, #tpu.memory_space<vmem>>, %arg8: memref<32x4xf32, #tpu.memory_space<vmem>>) attributes {dimension_semantics = [#tpu.dimension_semantics<parallel>], iteration_bounds = array<i64: 2>, scalar_prefetch = 0 : i64, scratch_operands = 0 : i64, tpu.core_type = #tpu.core_type<tc>, window_params = [{transform_indices = @transform_0, window_bounds = array<i64: 32, 33>}, {pipeline_mode = #tpu.pipeline_mode<synchronous>, transform_indices = @transform_1, window_bounds = array<i64: 33, 128>}, {pipeline_mode = #tpu.pipeline_mode<synchronous>, transform_indices = @transform_2, window_bounds = array<i64: 1, 128>}, {pipeline_mode = #tpu.pipeline_mode<synchronous>, transform_indices = @transform_3, window_bounds = array<i64: 128, 128>}, {pipeline_mode = #tpu.pipeline_mode<synchronous>, transform_indices = @transform_4, window_bounds = array<i64: 1, 128>}, {pipeline_mode = #tpu.pipeline_mode<synchronous>, transform_indices = @transform_5, window_bounds = array<i64: 128, 4>}, {pipeline_mode = #tpu.pipeline_mode<synchronous>, transform_indices = @transform_6, window_bounds = array<i64: 1, 4>}, {transform_indices = @transform_7, window_bounds = array<i64: 32, 4>}]} {
    %c0 = arith.constant 0 : index
    %c0_0 = arith.constant 0 : index
    %0 = vector.load %arg1[%c0, %c0_0] : memref<32x33xf32, #tpu.memory_space<vmem>>, vector<32x33xf32>
    %1 = arith.truncf %0 : vector<32x33xf32> to vector<32x33xbf16>
    %c0_1 = arith.constant 0 : index
    %c0_2 = arith.constant 0 : index
    %2 = vector.load %arg2[%c0_1, %c0_2] : memref<33x128xbf16, #tpu.memory_space<vmem>>, vector<33x128xbf16>
    %cst = arith.constant dense<0.000000e+00> : vector<32x128xf32>
    %3 = tpu.matmul %1, %2, %cst {dimension_numbers = #tpu.dot_dimension_numbers<[1], [0], [0], [1], [0, 0, 1, 1], [], []>} : vector<32x33xbf16>, vector<33x128xbf16>, vector<32x128xf32> -> vector<32x128xf32>
    %c0_3 = arith.constant 0 : index
    %c0_4 = arith.constant 0 : index
    %4 = vector.load %arg3[%c0_3, %c0_4] : memref<1x128xf32, #tpu.memory_space<vmem>>, vector<1x128xf32>
    %5 = vector.broadcast %4 : vector<1x128xf32> to vector<32x128xf32>
    %6 = arith.addf %3, %5 : vector<32x128xf32>
    %cst_5 = arith.constant 0.000000e+00 : f32
    %7 = vector.broadcast %cst_5 : f32 to vector<32x128xf32>
    %8 = arith.maximumf %6, %7 : vector<32x128xf32>
    %9 = arith.truncf %8 : vector<32x128xf32> to vector<32x128xbf16>
    %c0_6 = arith.constant 0 : index
    %c0_7 = arith.constant 0 : index
    %10 = vector.load %arg4[%c0_6, %c0_7] : memref<128x128xbf16, #tpu.memory_space<vmem>>, vector<128x128xbf16>
    %cst_8 = arith.constant dense<0.000000e+00> : vector<32x128xf32>
    %11 = tpu.matmul %9, %10, %cst_8 {dimension_numbers = #tpu.dot_dimension_numbers<[1], [0], [0], [1], [0, 0, 1, 1], [], []>} : vector<32x128xbf16>, vector<128x128xbf16>, vector<32x128xf32> -> vector<32x128xf32>
    %c0_9 = arith.constant 0 : index
    %c0_10 = arith.constant 0 : index
    %12 = vector.load %arg5[%c0_9, %c0_10] : memref<1x128xf32, #tpu.memory_space<vmem>>, vector<1x128xf32>
    %13 = vector.broadcast %12 : vector<1x128xf32> to vector<32x128xf32>
    %14 = arith.addf %11, %13 : vector<32x128xf32>
    %cst_11 = arith.constant 0.000000e+00 : f32
    %15 = vector.broadcast %cst_11 : f32 to vector<32x128xf32>
    %16 = arith.maximumf %14, %15 : vector<32x128xf32>
    %17 = arith.truncf %16 : vector<32x128xf32> to vector<32x128xbf16>
    %c0_12 = arith.constant 0 : index
    %c0_13 = arith.constant 0 : index
    %18 = vector.load %arg6[%c0_12, %c0_13] : memref<128x4xbf16, #tpu.memory_space<vmem>>, vector<128x4xbf16>
    %cst_14 = arith.constant dense<0.000000e+00> : vector<32x4xf32>
    %19 = tpu.matmul %17, %18, %cst_14 {dimension_numbers = #tpu.dot_dimension_numbers<[1], [0], [0], [1], [0, 0, 1, 1], [], []>} : vector<32x128xbf16>, vector<128x4xbf16>, vector<32x4xf32> -> vector<32x4xf32>
    %c0_15 = arith.constant 0 : index
    %c0_16 = arith.constant 0 : index
    %20 = vector.load %arg7[%c0_15, %c0_16] : memref<1x4xf32, #tpu.memory_space<vmem>>, vector<1x4xf32>
    %21 = vector.broadcast %20 : vector<1x4xf32> to vector<32x4xf32>
    %22 = arith.addf %19, %21 : vector<32x4xf32>
    %23 = math.tanh %22 : vector<32x4xf32>
    %c0_17 = arith.constant 0 : index
    %c0_18 = arith.constant 0 : index
    %24 = vector.load %arg8[%c0_17, %c0_18] : memref<32x4xf32, #tpu.memory_space<vmem>>, vector<32x4xf32>
    tpu.vector_store %arg8[%c0_17, %c0_18], %23 {strides = array<i32>} : memref<32x4xf32, #tpu.memory_space<vmem>>, vector<32x4xf32>,
    return
  }
  func.func @transform_0(%arg0: i32) -> (i32, i32) {
    %c0_i32 = arith.constant 0 : i32
    %c0_i32_0 = arith.constant 0 : i32
    return %arg0, %c0_i32 : i32, i32
  }
  func.func @transform_1(%arg0: i32) -> (i32, i32) {
    %c0_i32 = arith.constant 0 : i32
    %c0_i32_0 = arith.constant 0 : i32
    %c0_i32_1 = arith.constant 0 : i32
    return %c0_i32, %c0_i32_0 : i32, i32
  }
  func.func @transform_2(%arg0: i32) -> (i32, i32) {
    %c0_i32 = arith.constant 0 : i32
    %c0_i32_0 = arith.constant 0 : i32
    %c0_i32_1 = arith.constant 0 : i32
    return %c0_i32, %c0_i32_0 : i32, i32
  }
  func.func @transform_3(%arg0: i32) -> (i32, i32) {
    %c0_i32 = arith.constant 0 : i32
    %c0_i32_0 = arith.constant 0 : i32
    %c0_i32_1 = arith.constant 0 : i32
    return %c0_i32, %c0_i32_0 : i32, i32
  }
  func.func @transform_4(%arg0: i32) -> (i32, i32) {
    %c0_i32 = arith.constant 0 : i32
    %c0_i32_0 = arith.constant 0 : i32
    %c0_i32_1 = arith.constant 0 : i32
    return %c0_i32, %c0_i32_0 : i32, i32
  }
  func.func @transform_5(%arg0: i32) -> (i32, i32) {
    %c0_i32 = arith.constant 0 : i32
    %c0_i32_0 = arith.constant 0 : i32
    %c0_i32_1 = arith.constant 0 : i32
    return %c0_i32, %c0_i32_0 : i32, i32
  }
  func.func @transform_6(%arg0: i32) -> (i32, i32) {
    %c0_i32 = arith.constant 0 : i32
    %c0_i32_0 = arith.constant 0 : i32
    %c0_i32_1 = arith.constant 0 : i32
    return %c0_i32, %c0_i32_0 : i32, i32
  }
  func.func @transform_7(%arg0: i32) -> (i32, i32) {
    %c0_i32 = arith.constant 0 : i32
    %c0_i32_0 = arith.constant 0 : i32
    return %arg0, %c0_i32 : i32, i32
  }
}

</mosaic_0001>

<llo_original>
// kernel: actor_forward.1
$region0: #{actor_forward.1}
  #allocation0 [shape = 'u32[]', space=smem, size = 0x4, offset = 0x4, fixed_abs, tag = 'smem constant byte address 0x4 - core index']
  #allocation1 [shape = 'u32[144,128]{1,0:T(1,128)}', space=vmem, size = 0x12000, scoped, tag = 'internal scratch']
  %s0 = inlined_call_operand.vmem [shape: f32[64,33], index: 0, kind: input, shape index: {}]
  %s1 = inlined_call_operand.vmem [shape: bf16[33,128], index: 1, kind: input, shape index: {}]
  %s2 = inlined_call_operand.vmem [shape: f32[1,128], index: 2, kind: input, shape index: {}]
  %s3 = inlined_call_operand.vmem [shape: bf16[128,128], index: 3, kind: input, shape index: {}]
  %s4 = inlined_call_operand.vmem [shape: f32[1,128], index: 4, kind: input, shape index: {}]
  %s5 = inlined_call_operand.vmem [shape: bf16[128,4], index: 5, kind: input, shape index: {}]
  %s6 = inlined_call_operand.vmem [shape: f32[1,4], index: 6, kind: input, shape index: {}]
  %s7 = inlined_call_operand.vmem [shape: f32[64,4], index: 7, kind: output, shape index: {}]
  %s8 = sld [smem:[#allocation0]]
  $region61: #{actor_forward.1} parent=0
    _
  %s10 = ssub.s32 1, %s8
  %s11 = scalar_select 0, %s10, %s8
  loop: start=0, step=1, limit=4
  $region2: #{actor_forward.1} parent=0 // loop_pre_header
    _
  $region3: #{actor_forward.1} parent=0 // loop_header
    %s13 = sphi 0, %s17
    %p14 = scmp.ge.s32.totalorder %s13, 4
    %s23 = sphi 0, %s25
    %s26 = sphi 0, %s23
    %s27 = sphi 0, %s26
    %s43 = sphi 0, %s27
    %s47 = sphi 0, %s47
    %s49 = sphi 0, %s47
    %s50 = sphi 0, %s49
    %s64 = sphi 0, %s50
    %s68 = sphi 0, %s68
    %s70 = sphi 0, %s68
    %s71 = sphi 0, %s70
    %s85 = sphi 0, %s71
    %s89 = sphi 0, %s89
    %s91 = sphi 0, %s89
    %s92 = sphi 0, %s91
    %s106 = sphi 0, %s92
    %s110 = sphi 0, %s110
    %s112 = sphi 0, %s110
    %s113 = sphi 0, %s112
    %s127 = sphi 0, %s113
    %s131 = sphi 0, %s131
    %s133 = sphi 0, %s131
    %s134 = sphi 0, %s133
    %s148 = sphi 0, %s134
    %s152 = sphi 0, %s152
    %s154 = sphi 0, %s152
    %s155 = sphi 0, %s154
    %s169 = sphi 0, %s155
    %s175 = sphi 0, %s177
    %s178 = sphi 0, %s175
    %s179 = sphi 0, %s178
    %s195 = sphi 0, %s179
  $region4: #{actor_forward.1} parent=0 // loop_header_branch
    %16 = sbr.rel (%p14) target = $region8
  $region5: #{actor_forward.1} parent=0 // loop_body
    %s18 = ssub.s32 %s13, 1
    %s19 = ssub.s32 %s13, 2
    %s20 = sadd.s32 %s13, 1
    %s21 = ssub.s32 %s13, %s20
    %p22 = scmp.eq.s32.totalorder %s21, 0
    %s24 = sadd.s32 %s23, 1
    %s25 = scalar_select %p22, %s23, %s24
    %p28 = pneg %p22
    %p29 = scmp.eq.s32.totalorder %s13, 1
    %p30 = por %p28, %p29
    %p31 = scmp.ne.s32.totalorder %s23, %s26
    %p32 = scmp.eq.s32.totalorder %s13, 0
    %p33 = por %p31, %p32
    %p34 = scmp.ne.s32.totalorder %s23, %s26
    %p35 = scmp.eq.s32.totalorder %s18, 1
    %p36 = por %p34, %p35
    %p37 = scmp.ne.s32.totalorder %s26, %s27
    %p38 = scmp.eq.s32.totalorder %s18, 0
    %p39 = por %p37, %p38
    %p40 = scmp.ne.s32.totalorder %s26, %s27
    %p41 = scmp.eq.s32.totalorder %s19, 1
    %p42 = por %p40, %p41
    %p44 = scmp.ne.s32.totalorder %s27, %s43
    %p45 = scmp.eq.s32.totalorder %s19, 0
    %p46 = por %p44, %p45
    %s48 = sadd.s32 %s47, 1
    %p51 = scmp.eq.s32.totalorder %s13, 1
    %p52 = scmp.ne.s32.totalorder %s47, %s49
    %p53 = scmp.eq.s32.totalorder %s13, 0
    %p54 = por %p52, %p53
    %p55 = scmp.ne.s32.totalorder %s47, %s49
    %p56 = scmp.eq.s32.totalorder %s18, 1
    %p57 = por %p55, %p56
    %p58 = scmp.ne.s32.totalorder %s49, %s50
    %p59 = scmp.eq.s32.totalorder %s18, 0
    %p60 = por %p58, %p59
    %p61 = scmp.ne.s32.totalorder %s49, %s50
    %p62 = scmp.eq.s32.totalorder %s19, 1
    %p63 = por %p61, %p62
    %p65 = scmp.ne.s32.totalorder %s50, %s64
    %p66 = scmp.eq.s32.totalorder %s19, 0
    %p67 = por %p65, %p66
    %s69 = sadd.s32 %s68, 1
    %p72 = scmp.eq.s32.totalorder %s13, 1
    %p73 = scmp.ne.s32.totalorder %s68, %s70
    %p74 = scmp.eq.s32.totalorder %s13, 0
    %p75 = por %p73, %p74
    %p76 = scmp.ne.s32.totalorder %s68, %s70
    %p77 = scmp.eq.s32.totalorder %s18, 1
    %p78 = por %p76, %p77
    %p79 = scmp.ne.s32.totalorder %s70, %s71
    %p80 = scmp.eq.s32.totalorder %s18, 0
    %p81 = por %p79, %p80
    %p82 = scmp.ne.s32.totalorder %s70, %s71
    %p83 = scmp.eq.s32.totalorder %s19, 1
    %p84 = por %p82, %p83
    %p86 = scmp.ne.s32.totalorder %s71, %s85
    %p87 = scmp.eq.s32.totalorder %s19, 0
    %p88 = por %p86, %p87
    %s90 = sadd.s32 %s89, 1
    %p93 = scmp.eq.s32.totalorder %s13, 1
    %p94 = scmp.ne.s32.totalorder %s89, %s91
    %p95 = scmp.eq.s32.totalorder %s13, 0
    %p96 = por %p94, %p95
    %p97 = scmp.ne.s32.totalorder %s89, %s91
    %p98 = scmp.eq.s32.totalorder %s18, 1
    %p99 = por %p97, %p98
    %p100 = scmp.ne.s32.totalorder %s91, %s92
    %p101 = scmp.eq.s32.totalorder %s18, 0
    %p102 = por %p100, %p101
    %p103 = scmp.ne.s32.totalorder %s91, %s92
    %p104 = scmp.eq.s32.totalorder %s19, 1
    %p105 = por %p103, %p104
    %p107 = scmp.ne.s32.totalorder %s92, %s106
    %p108 = scmp.eq.s32.totalorder %s19, 0
    %p109 = por %p107, %p108
    %s111 = sadd.s32 %s110, 1
    %p114 = scmp.eq.s32.totalorder %s13, 1
    %p115 = scmp.ne.s32.totalorder %s110, %s112
    %p116 = scmp.eq.s32.totalorder %s13, 0
    %p117 = por %p115, %p116
    %p118 = scmp.ne.s32.totalorder %s110, %s112
    %p119 = scmp.eq.s32.totalorder %s18, 1
    %p120 = por %p118, %p119
    %p121 = scmp.ne.s32.totalorder %s112, %s113
    %p122 = scmp.eq.s32.totalorder %s18, 0
    %p123 = por %p121, %p122
    %p124 = scmp.ne.s32.totalorder %s112, %s113
    %p125 = scmp.eq.s32.totalorder %s19, 1
    %p126 = por %p124, %p125
    %p128 = scmp.ne.s32.totalorder %s113, %s127
    %p129 = scmp.eq.s32.totalorder %s19, 0
    %p130 = por %p128, %p129
    %s132 = sadd.s32 %s131, 1
    %p135 = scmp.eq.s32.totalorder %s13, 1
    %p136 = scmp.ne.s32.totalorder %s131, %s133
    %p137 = scmp.eq.s32.totalorder %s13, 0
    %p138 = por %p136, %p137
    %p139 = scmp.ne.s32.totalorder %s131, %s133
    %p140 = scmp.eq.s32.totalorder %s18, 1
    %p141 = por %p139, %p140
    %p142 = scmp.ne.s32.totalorder %s133, %s134
    %p143 = scmp.eq.s32.totalorder %s18, 0
    %p144 = por %p142, %p143
    %p145 = scmp.ne.s32.totalorder %s133, %s134
    %p146 = scmp.eq.s32.totalorder %s19, 1
    %p147 = por %p145, %p146
    %p149 = scmp.ne.s32.totalorder %s134, %s148
    %p150 = scmp.eq.s32.totalorder %s19, 0
    %p151 = por %p149, %p150
    %s153 = sadd.s32 %s152, 1
    %p156 = scmp.eq.s32.totalorder %s13, 1
    %p157 = scmp.ne.s32.totalorder %s152, %s154
    %p158 = scmp.eq.s32.totalorder %s13, 0
    %p159 = por %p157, %p158
    %p160 = scmp.ne.s32.totalorder %s152, %s154
    %p161 = scmp.eq.s32.totalorder %s18, 1
    %p162 = por %p160, %p161
    %p163 = scmp.ne.s32.totalorder %s154, %s155
    %p164 = scmp.eq.s32.totalorder %s18, 0
    %p165 = por %p163, %p164
    %p166 = scmp.ne.s32.totalorder %s154, %s155
    %p167 = scmp.eq.s32.totalorder %s19, 1
    %p168 = por %p166, %p167
    %p170 = scmp.ne.s32.totalorder %s155, %s169
    %p171 = scmp.eq.s32.totalorder %s19, 0
    %p172 = por %p170, %p171
    %s173 = ssub.s32 %s13, %s20
    %p174 = scmp.eq.s32.totalorder %s173, 0
    %s176 = sadd.s32 %s175, 1
    %s177 = scalar_select %p174, %s175, %s176
    %p180 = pneg %p174
    %p181 = scmp.eq.s32.totalorder %s13, 1
    %p182 = por %p180, %p181
    %p183 = scmp.ne.s32.totalorder %s175, %s178
    %p184 = scmp.eq.s32.totalorder %s13, 0
    %p185 = por %p183, %p184
    %p186 = scmp.ne.s32.totalorder %s175, %s178
    %p187 = scmp.eq.s32.totalorder %s18, 1
    %p188 = por %p186, %p187
    %p189 = scmp.ne.s32.totalorder %s178, %s179
    %p190 = scmp.eq.s32.totalorder %s18, 0
    %p191 = por %p189, %p190
    %p192 = scmp.ne.s32.totalorder %s178, %s179
    %p193 = scmp.eq.s32.totalorder %s19, 1
    %p194 = por %p192, %p193
    %p196 = scmp.ne.s32.totalorder %s179, %s195
    %p197 = scmp.eq.s32.totalorder %s19, 0
    %p198 = por %p196, %p197
    %p199 = scmp.le.s32.totalorder 1, %s13
    %p200 = scmp.lt.s32.totalorder %s13, 3
    %p201 = pnand %p199, %p200
    %p202 = pneg %p201
    // Predicated region
    $region9: #{actor_forward.1} parent=5 // pred_check
      _
    $region10: #{actor_forward.1} parent=5 // pred_check_branch
      %204 = sbr.rel (%p201) target = $region12
    $region11: #{actor_forward.1} parent=5 // pred_region
      %s205 = ssub.s32 %s13, 1
      // Predicated region
      $region13: #{actor_forward.1} parent=11 // pred_check
        %p206 = pneg %p60
      $region14: #{actor_forward.1} parent=11 // pred_check_branch
        %208 = sbr.rel (%p206) target = $region16
      $region15: #{actor_forward.1} parent=11 // pred_region
        _
      $region16: #{actor_forward.1} parent=11 // pred_fallthru
        _
      // Predicated region
      $region17: #{actor_forward.1} parent=11 // pred_check
        %p209 = pneg %p81
      $region18: #{actor_forward.1} parent=11 // pred_check_branch
        %211 = sbr.rel (%p209) target = $region20
      $region19: #{actor_forward.1} parent=11 // pred_region
        _
      $region20: #{actor_forward.1} parent=11 // pred_fallthru
        _
      // Predicated region
      $region21: #{actor_forward.1} parent=11 // pred_check
        %p212 = pneg %p102
      $region22: #{actor_forward.1} parent=11 // pred_check_branch
        %214 = sbr.rel (%p212) target = $region24
      $region23: #{actor_forward.1} parent=11 // pred_region
        _
      $region24: #{actor_forward.1} parent=11 // pred_fallthru
        _
      // Predicated region
      $region25: #{actor_forward.1} parent=11 // pred_check
        %p215 = pneg %p123
      $region26: #{actor_forward.1} parent=11 // pred_check_branch
        %217 = sbr.rel (%p215) target = $region28
      $region27: #{actor_forward.1} parent=11 // pred_region
        _
      $region28: #{actor_forward.1} parent=11 // pred_fallthru
        _
      // Predicated region
      $region29: #{actor_forward.1} parent=11 // pred_check
        %p218 = pneg %p144
      $region30: #{actor_forward.1} parent=11 // pred_check_branch
        %220 = sbr.rel (%p218) target = $region32
      $region31: #{actor_forward.1} parent=11 // pred_region
        _
      $region32: #{actor_forward.1} parent=11 // pred_fallthru
        _
      // Predicated region
      $region33: #{actor_forward.1} parent=11 // pred_check
        %p221 = pneg %p165
      $region34: #{actor_forward.1} parent=11 // pred_check_branch
        %223 = sbr.rel (%p221) target = $region36
      $region35: #{actor_forward.1} parent=11 // pred_region
        _
      $region36: #{actor_forward.1} parent=11 // pred_fallthru
        _
    $region12: #{actor_forward.1} parent=5 // pred_fallthru
      _
    %p224 = scmp.lt.s32.totalorder %s13, 2
    // Predicated region
    $region37: #{actor_forward.1} parent=5 // pred_check
      %p225 = pneg %p224
    $region38: #{actor_forward.1} parent=5 // pred_check_branch
      %227 = sbr.rel (%p225) target = $region40
    $region39: #{actor_forward.1} parent=5 // pred_region
      // Predicated region
      $region41: #{actor_forward.1} parent=39 // pred_check
        %p228 = pneg %p33
      $region42: #{actor_forward.1} parent=39 // pred_check_branch
        %230 = sbr.rel (%p228) target = $region44
      $region43: #{actor_forward.1} parent=39 // pred_region
        %s231 = smul.u32 4, %s13
        %p232 = scmp.lt.s32.totalorder %s231, 7
        %s233 = scalar_select %p232, %s231, 7
        %s234 = smul.addr %s233, 8
        %s235 = scalar_lea.vmem %s0, %s234
        %s236 = smul.u32 4, %s13
      $region44: #{actor_forward.1} parent=39 // pred_fallthru
        _
    $region40: #{actor_forward.1} parent=5 // pred_fallthru
      _
    %p237 = scmp.le.s32.totalorder 1, %s13
    %p238 = scmp.lt.s32.totalorder %s13, 3
    %p239 = pnand %p237, %p238
    %p240 = pneg %p239
    // Predicated region
    $region45: #{actor_forward.1} parent=5 // pred_check
      _
    $region46: #{actor_forward.1} parent=5 // pred_check_branch
      %242 = sbr.rel (%p239) target = $region48
    $region47: #{actor_forward.1} parent=5 // pred_region
      %s243 = ssub.s32 %s13, 1
      %s244 = smul.u32 4, %s18
      %p245 = scmp.lt.s32.totalorder %s244, 7
      %s246 = scalar_select %p245, %s244, 7
      %s247 = smul.addr %s246, 8
      %s248 = scalar_lea.vmem %s0, %s247
      %p249 = pneg %p39
      %p250 = pneg %p36
      %p251 = pneg %p60
      %p252 = pneg %p57
      %p253 = pneg %p81
      %p254 = pneg %p78
      %p255 = pneg %p102
      %p256 = pneg %p99
      %p257 = pneg %p123
      %p258 = pneg %p120
      %p259 = pneg %p144
      %p260 = pneg %p141
      %p261 = pneg %p165
      %p262 = pneg %p162
      %p263 = pneg %p191
      %p264 = pneg %p188
      %s265 = smul.u32 4, %s18
      %p266 = scmp.lt.s32.totalorder %s265, 7
      %s267 = scalar_select %p266, %s265, 7
      %s268 = smul.addr %s267, 8
      %s269 = scalar_lea.vmem %s7, %s268
      %s270 = smul.u32 4, %s18
      %p271 = scmp.lt.s32.totalorder %s270, 7
      %s272 = scalar_select %p271, %s270, 7
      %s273 = smul.addr %s272, 8
      %s274 = scalar_lea.vmem %s0, %s273
      %s275 = smul.u32 4, %s18
      %s276 = smul.u32 4, %s18
      %p277 = scmp.lt.s32.totalorder %s276, 7
      %s278 = scalar_select %p277, %s276, 7
      %s279 = smul.addr %s278, 8
      %s280 = scalar_lea.vmem %s7, %s279
      %s281 = smul.u32 4, %s18
      %v283 = vld [vmem:[%s274] sm:$0xff]
      %v284 = vld [vmem:[%s274 + $0x8] sm:$0xff]
      %v285 = vld [vmem:[%s274 + $0x10] sm:$0xff]
      %v286 = vld [vmem:[%s274 + $0x18] sm:$0xff]
      %v287 = vpack.c.bf16 %v284, %v283
      %v288 = vpack.c.bf16 %v286, %v285
      %v289 = vld [vmem:[%s1] sm:$0xf]
      %v290 = vld [vmem:[%s1 + $0x4] sm:$0xf]
      %v291 = vld [vmem:[%s1 + $0x8] sm:$0xf]
      %v292 = vld [vmem:[%s1 + $0xc] sm:$0xf]
      %v293 = vld [vmem:[%s1 + $0x10] sm:$0x1]
      %v294 = vld [vmem:[%s2] sm:$0x1]
      %v296 = vlaneseq
      %v297 = vshrl.u32 %v296, 7
      %v298 = vsub.s32 0, %v297
      %v299 = vrot.slane %v294, %v298
      %v306 = vunpack.c.l.b16 %v289
      %v307 = vunpack.c.l.b16 %v290
      %v308 = vunpack.c.l.b16 %v291
      %v309 = vunpack.c.l.b16 %v292
      %v310 = vunpack.c.l.b16 %v293
      %v311 = vpack.c.b16 %v307, %v306
      %v312 = vpack.c.b16 %v309, %v308
      %v313 = vpack.c.b16 %v310, %v310
      %vm316 = vcmask 269312
      %v318 = vsel %vm316, %v287, 0
      %v321 = vsel %vm316, %v288, 0
      %vm323 = vcmask 1040384
      %v324 = vsel 0, 4294967295, 65535
      %v325 = vsel %vm323, %v324, 0
      %v327 = vand.u32 %v313, %v325
      %329 = vmatprep.subr.bf16.mxu0 0
      %330 = vmatpush1.bf16.msra.mxu0 %v311
      %331 = vmatprep.subr.bf16.mxu0 0
      %332 = vmatpush1.bf16.msra.mxu0 %v312
      %333 = vmatprep.subr.bf16.mxu0 0
      %334 = vmatpush1.bf16.msra.mxu0 %v327
      %335 = vmatprep.subr.bf16.mxu0 0
      %336 = vmatpush1.bf16.msra.mxu0 0
      %337 = vmatprep.subr.bf16.mxu0 0
      %338 = vmatpush1.bf16.msra.mxu0 0
      %339 = vmatprep.subr.bf16.mxu0 0
      %340 = vmatpush1.bf16.msra.mxu0 0
      %341 = vmatprep.subr.bf16.mxu0 0
      %342 = vmatpush1.bf16.msra.mxu0 0
      %343 = vmatprep.subr.bf16.mxu0 0
      %344 = vmatpush1.bf16.msra.mxu0 0
      %345 = vmatprep.subr.bf16.mxu0 0
      %346 = vmatpush1.bf16.msra.mxu0 0
      %347 = vmatprep.subr.bf16.mxu0 0
      %348 = vmatpush1.bf16.msra.mxu0 0
      %349 = vmatprep.subr.bf16.mxu0 0
      %350 = vmatpush1.bf16.msra.mxu0 0
      %351 = vmatprep.subr.bf16.mxu0 0
      %352 = vmatpush1.bf16.msra.mxu0 0
      %353 = vmatprep.subr.bf16.mxu0 0
      %354 = vmatpush1.bf16.msra.mxu0 0
      %355 = vmatprep.subr.bf16.mxu0 0
      %356 = vmatpush1.bf16.msra.mxu0 0
      %357 = vmatprep.subr.bf16.mxu0 0
      %358 = vmatpush1.bf16.msra.mxu0 0
      %359 = vmatprep.subr.bf16.mxu0 0
      %360 = vmatpush1.bf16.msra.mxu0 0
      %361 = vmatprep.mubr.bf16.mxu0 0
      %362 = vmatmul.mubr.bf16.gmra.mrb[0].mxu0 %v318
      %v363 = vpop.f32.mrb[0].mxu0
      %v364 = vadd.f32 %v299, %v363
      %v365 = vpop.f32.mrb[0].mxu0
      %v366 = vpop.f32.mrb[0].mxu0
      %v367 = vadd.f32 %v299, %v366
      %v368 = vpop.f32.mrb[0].mxu0
      %369 = vmatprep.mubr.bf16.mxu0 0
      %370 = vmatmul.mubr.bf16.gmra.mrb[0].mxu0 %v321
      %v371 = vpop.f32.mrb[0].mxu0
      %v372 = vadd.f32 %v299, %v371
      %v373 = vpop.f32.mrb[0].mxu0
      %v374 = vpop.f32.mrb[0].mxu0
      %v375 = vadd.f32 %v299, %v374
      %v376 = vpop.f32.mrb[0].mxu0
      %377 = vdwg.mxu0
      %v378 = vmax.f32 %v364, 0.0
      %v379 = vmax.f32 %v367, 0.0
      %v380 = vmax.f32 %v372, 0.0
      %v381 = vmax.f32 %v375, 0.0
      %v382 = vpack.c.bf16 %v379, %v378
      %v383 = vpack.c.bf16 %v381, %v380
      %v384 = vld [vmem:[%s3] sm:$0xf]
      %v385 = vld [vmem:[%s3 + $0x4] sm:$0xf]
      %v386 = vld [vmem:[%s3 + $0x8] sm:$0xf]
      %v387 = vld [vmem:[%s3 + $0xc] sm:$0xf]
      %v388 = vld [vmem:[%s3 + $0x10] sm:$0xf]
      %v389 = vld [vmem:[%s3 + $0x14] sm:$0xf]
      %v390 = vld [vmem:[%s3 + $0x18] sm:$0xf]
      %v391 = vld [vmem:[%s3 + $0x1c] sm:$0xf]
      %v392 = vld [vmem:[%s3 + $0x20] sm:$0xf]
      %v393 = vld [vmem:[%s3 + $0x24] sm:$0xf]
      %v394 = vld [vmem:[%s3 + $0x28] sm:$0xf]
      %v395 = vld [vmem:[%s3 + $0x2c] sm:$0xf]
      %v396 = vld [vmem:[%s3 + $0x30] sm:$0xf]
      %v397 = vld [vmem:[%s3 + $0x34] sm:$0xf]
      %v398 = vld [vmem:[%s3 + $0x38] sm:$0xf]
      %v399 = vld [vmem:[%s3 + $0x3c] sm:$0xf]
      %v400 = vld [vmem:[%s4] sm:$0x1]
      %v402 = vlaneseq
      %v403 = vshrl.u32 %v402, 7
      %v404 = vsub.s32 0, %v403
      %v405 = vrot.slane %v400, %v404
      %v423 = vunpack.c.l.b16 %v384
      %v424 = vunpack.c.l.b16 %v385
      %v425 = vunpack.c.l.b16 %v386
      %v426 = vunpack.c.l.b16 %v387
      %v427 = vunpack.c.l.b16 %v388
      %v428 = vunpack.c.l.b16 %v389
      %v429 = vunpack.c.l.b16 %v390
      %v430 = vunpack.c.l.b16 %v391
      %v431 = vunpack.c.l.b16 %v392
      %v432 = vunpack.c.l.b16 %v393
      %v433 = vunpack.c.l.b16 %v394
      %v434 = vunpack.c.l.b16 %v395
      %v435 = vunpack.c.l.b16 %v396
      %v436 = vunpack.c.l.b16 %v397
      %v437 = vunpack.c.l.b16 %v398
      %v438 = vunpack.c.l.b16 %v399
      %v439 = vpack.c.b16 %v424, %v423
      %v440 = vpack.c.b16 %v426, %v425
      %v441 = vpack.c.b16 %v428, %v427
      %v442 = vpack.c.b16 %v430, %v429
      %v443 = vpack.c.b16 %v432, %v431
      %v444 = vpack.c.b16 %v434, %v433
      %v445 = vpack.c.b16 %v436, %v435
      %v446 = vpack.c.b16 %v438, %v437
      %455 = vmatprep.subr.bf16.mxu0 0
      %456 = vmatpush1.bf16.msra.mxu0 %v439
      %457 = vmatprep.subr.bf16.mxu0 0
      %458 = vmatpush1.bf16.msra.mxu0 %v440
      %459 = vmatprep.subr.bf16.mxu0 0
      %460 = vmatpush1.bf16.msra.mxu0 %v441
      %461 = vmatprep.subr.bf16.mxu0 0
      %462 = vmatpush1.bf16.msra.mxu0 %v442
      %463 = vmatprep.subr.bf16.mxu0 0
      %464 = vmatpush1.bf16.msra.mxu0 %v443
      %465 = vmatprep.subr.bf16.mxu0 0
      %466 = vmatpush1.bf16.msra.mxu0 %v444
      %467 = vmatprep.subr.bf16.mxu0 0
      %468 = vmatpush1.bf16.msra.mxu0 %v445
      %469 = vmatprep.subr.bf16.mxu0 0
      %470 = vmatpush1.bf16.msra.mxu0 %v446
      %471 = vmatprep.subr.bf16.mxu0 0
      %472 = vmatpush1.bf16.msra.mxu0 0
      %473 = vmatprep.subr.bf16.mxu0 0
      %474 = vmatpush1.bf16.msra.mxu0 0
      %475 = vmatprep.subr.bf16.mxu0 0
      %476 = vmatpush1.bf16.msra.mxu0 0
      %477 = vmatprep.subr.bf16.mxu0 0
      %478 = vmatpush1.bf16.msra.mxu0 0
      %479 = vmatprep.subr.bf16.mxu0 0
      %480 = vmatpush1.bf16.msra.mxu0 0
      %481 = vmatprep.subr.bf16.mxu0 0
      %482 = vmatpush1.bf16.msra.mxu0 0
      %483 = vmatprep.subr.bf16.mxu0 0
      %484 = vmatpush1.bf16.msra.mxu0 0
      %485 = vmatprep.subr.bf16.mxu0 0
      %486 = vmatpush1.bf16.msra.mxu0 0
      %487 = vmatprep.mubr.bf16.mxu0 0
      %488 = vmatmul.mubr.bf16.gmra.mrb[0].mxu0 %v382
      %v489 = vpop.f32.mrb[0].mxu0
      %v490 = vadd.f32 %v405, %v489
      %v491 = vpop.f32.mrb[0].mxu0
      %v492 = vpop.f32.mrb[0].mxu0
      %v493 = vadd.f32 %v405, %v492
      %v494 = vpop.f32.mrb[0].mxu0
      %495 = vmatprep.mubr.bf16.mxu0 0
      %496 = vmatmul.mubr.bf16.gmra.mrb[0].mxu0 %v383
      %v497 = vpop.f32.mrb[0].mxu0
      %v498 = vadd.f32 %v405, %v497
      %v499 = vpop.f32.mrb[0].mxu0
      %v500 = vpop.f32.mrb[0].mxu0
      %v501 = vadd.f32 %v405, %v500
      %v502 = vpop.f32.mrb[0].mxu0
      %503 = vdwg.mxu0
      %v504 = vmax.f32 %v490, 0.0
      %v505 = vmax.f32 %v493, 0.0
      %v506 = vmax.f32 %v498, 0.0
      %v507 = vmax.f32 %v501, 0.0
      %v508 = vpack.c.bf16 %v505, %v504
      %v509 = vpack.c.bf16 %v507, %v506
      %v510 = vld [vmem:[%s5] sm:$0xf]
      %v511 = vld [vmem:[%s5 + $0x4] sm:$0xf]
      %v512 = vld [vmem:[%s5 + $0x8] sm:$0xf]
      %v513 = vld [vmem:[%s5 + $0xc] sm:$0xf]
      %v514 = vld [vmem:[%s5 + $0x10] sm:$0xf]
      %v515 = vld [vmem:[%s5 + $0x14] sm:$0xf]
      %v516 = vld [vmem:[%s5 + $0x18] sm:$0xf]
      %v517 = vld [vmem:[%s5 + $0x1c] sm:$0xf]
      %v518 = vld [vmem:[%s5 + $0x20] sm:$0xf]
      %v519 = vld [vmem:[%s5 + $0x24] sm:$0xf]
      %v520 = vld [vmem:[%s5 + $0x28] sm:$0xf]
      %v521 = vld [vmem:[%s5 + $0x2c] sm:$0xf]
      %v522 = vld [vmem:[%s5 + $0x30] sm:$0xf]
      %v523 = vld [vmem:[%s5 + $0x34] sm:$0xf]
      %v524 = vld [vmem:[%s5 + $0x38] sm:$0xf]
      %v525 = vld [vmem:[%s5 + $0x3c] sm:$0xf]
      %v526 = vld [vmem:[%s6] sm:$0x1]
      %v528 = vlaneseq
      %v529 = vshrl.u32 %v528, 7
      %v530 = vsub.s32 0, %v529
      %v531 = vrot.slane %v526, %v530
      %v549 = vunpack.c.l.b16 %v510
      %v550 = vunpack.c.l.b16 %v511
      %v551 = vunpack.c.l.b16 %v512
      %v552 = vunpack.c.l.b16 %v513
      %v553 = vunpack.c.l.b16 %v514
      %v554 = vunpack.c.l.b16 %v515
      %v555 = vunpack.c.l.b16 %v516
      %v556 = vunpack.c.l.b16 %v517
      %v557 = vunpack.c.l.b16 %v518
      %v558 = vunpack.c.l.b16 %v519
      %v559 = vunpack.c.l.b16 %v520
      %v560 = vunpack.c.l.b16 %v521
      %v561 = vunpack.c.l.b16 %v522
      %v562 = vunpack.c.l.b16 %v523
      %v563 = vunpack.c.l.b16 %v524
      %v564 = vunpack.c.l.b16 %v525
      %v565 = vpack.c.b16 %v550, %v549
      %v566 = vpack.c.b16 %v552, %v551
      %v567 = vpack.c.b16 %v554, %v553
      %v568 = vpack.c.b16 %v556, %v555
      %v569 = vpack.c.b16 %v558, %v557
      %v570 = vpack.c.b16 %v560, %v559
      %v571 = vpack.c.b16 %v562, %v561
      %v572 = vpack.c.b16 %v564, %v563
      %581 = vmatprep.subr.bf16.mxu0 0
      %582 = vmatpush1.bf16.msra.mxu0 %v565
      %583 = vmatprep.subr.bf16.mxu0 0
      %584 = vmatpush1.bf16.msra.mxu0 %v566
      %585 = vmatprep.subr.bf16.mxu0 0
      %586 = vmatpush1.bf16.msra.mxu0 %v567
      %587 = vmatprep.subr.bf16.mxu0 0
      %588 = vmatpush1.bf16.msra.mxu0 %v568
      %589 = vmatprep.subr.bf16.mxu0 0
      %590 = vmatpush1.bf16.msra.mxu0 %v569
      %591 = vmatprep.subr.bf16.mxu0 0
      %592 = vmatpush1.bf16.msra.mxu0 %v570
      %593 = vmatprep.subr.bf16.mxu0 0
      %594 = vmatpush1.bf16.msra.mxu0 %v571
      %595 = vmatprep.subr.bf16.mxu0 0
      %596 = vmatpush1.bf16.msra.mxu0 %v572
      %597 = vmatprep.subr.bf16.mxu0 0
      %598 = vmatpush1.bf16.msra.mxu0 0
      %599 = vmatprep.subr.bf16.mxu0 0
      %600 = vmatpush1.bf16.msra.mxu0 0
      %601 = vmatprep.subr.bf16.mxu0 0
      %602 = vmatpush1.bf16.msra.mxu0 0
      %603 = vmatprep.subr.bf16.mxu0 0
      %604 = vmatpush1.bf16.msra.mxu0 0
      %605 = vmatprep.subr.bf16.mxu0 0
      %606 = vmatpush1.bf16.msra.mxu0 0
      %607 = vmatprep.subr.bf16.mxu0 0
      %608 = vmatpush1.bf16.msra.mxu0 0
      %609 = vmatprep.subr.bf16.mxu0 0
      %610 = vmatpush1.bf16.msra.mxu0 0
      %611 = vmatprep.subr.bf16.mxu0 0
      %612 = vmatpush1.bf16.msra.mxu0 0
      %613 = vmatprep.mubr.bf16.mxu0 0
      %614 = vmatmul.mubr.bf16.gmra.mrb[0].mxu0 %v508
      %v615 = vpop.f32.mrb[0].mxu0
      %v616 = vadd.f32 %v531, %v615
      %v617 = vpop.f32.mrb[0].mxu0
      %v618 = vpop.f32.mrb[0].mxu0
      %v619 = vadd.f32 %v531, %v618
      %v620 = vpop.f32.mrb[0].mxu0
      %621 = vmatprep.mubr.bf16.mxu0 0
      %622 = vmatmul.mubr.bf16.gmra.mrb[0].mxu0 %v509
      %v623 = vpop.f32.mrb[0].mxu0
      %v624 = vadd.f32 %v531, %v623
      %v625 = vpop.f32.mrb[0].mxu0
      %v626 = vpop.f32.mrb[0].mxu0
      %v627 = vadd.f32 %v531, %v626
      %v628 = vpop.f32.mrb[0].mxu0
      %629 = vdwg.mxu0
      %v630 = vtanh.pop %v616
      %v631 = vtanh.pop %v619
      %v632 = vtanh.pop %v624
      %v633 = vtanh.pop %v627
      %vm634 = vcmask 31744
      %635 = vst.msk [vmem:[%s280] sm:$0xff] %vm634, %v630
      %636 = vst.msk [vmem:[%s280 + $0x8] sm:$0xff] %vm634, %v631
      %637 = vst.msk [vmem:[%s280 + $0x10] sm:$0xff] %vm634, %v632
      %638 = vst.msk [vmem:[%s280 + $0x18] sm:$0xff] %vm634, %v633
      %s639 = smul.u32 4, %s18
      %p640 = scmp.lt.s32.totalorder %s639, 7
      %s641 = scalar_select %p640, %s639, 7
      %s642 = smul.addr %s641, 8
      %s643 = scalar_lea.vmem %s7, %s642
      // Predicated region
      $region49: #{actor_forward.1} parent=47 // pred_check
        %p644 = pneg %p188
      $region50: #{actor_forward.1} parent=47 // pred_check_branch
        %646 = sbr.rel (%p644) target = $region52
      $region51: #{actor_forward.1} parent=47 // pred_region
        %s647 = smul.u32 4, %s18
      $region52: #{actor_forward.1} parent=47 // pred_fallthru
        _
    $region48: #{actor_forward.1} parent=5 // pred_fallthru
      _
    %p648 = scmp.le.s32.totalorder 2, %s13
    // Predicated region
    $region53: #{actor_forward.1} parent=5 // pred_check
      %p649 = pneg %p648
    $region54: #{actor_forward.1} parent=5 // pred_check_branch
      %651 = sbr.rel (%p649) target = $region56
    $region55: #{actor_forward.1} parent=5 // pred_region
      %s652 = ssub.s32 %s13, 2
      // Predicated region
      $region57: #{actor_forward.1} parent=55 // pred_check
        %p653 = pneg %p194
      $region58: #{actor_forward.1} parent=55 // pred_check_branch
        %655 = sbr.rel (%p653) target = $region60
      $region59: #{actor_forward.1} parent=55 // pred_region
        %s656 = smul.u32 4, %s19
        %p657 = scmp.lt.s32.totalorder %s656, 7
        %s658 = scalar_select %p657, %s656, 7
        %s659 = smul.addr %s658, 8
        %s660 = scalar_lea.vmem %s7, %s659
      $region60: #{actor_forward.1} parent=55 // pred_fallthru
        _
    $region56: #{actor_forward.1} parent=5 // pred_fallthru
      _
  $region6: #{actor_forward.1} parent=0 // loop_footer
    %s17 = sadd.s32 1, %s13
  $region7: #{actor_forward.1} parent=0 // loop_footer_branch
    %12 = sbr.rel target = $region3
  $region8: #{actor_forward.1} parent=0 // loop_exit
    _

</llo_original>
